<compile_context>
chip_gen: v7x
topology: tpu7x:2x2x1
jax: 0.10.0
libtpu: 0.0.40
codegen_flags: <defaults>
</compile_context>

<pallas_src>
import functools

import jax
import jax.numpy as jnp
from jax.experimental import pallas as pl
from jax.experimental.pallas import tpu as pltpu

KERNEL = 3
CH = [128, 64, 64]            # output channels of the three convs
OUT_DIM = sum(CH)             # 256


def _round_up(x, m):
    return (x + m - 1) // m * m


def sentence_encoder_kernel(x_ref, w1_ref, b1_ref, w2_ref, b2_ref,
                            w3_ref, b3_ref, o_ref, *, L, D):
    NB = x_ref.shape[0]
    M = NB * L

    # Lane-dense (NB, L*D) block -> t-major (M, D) rows: row t*NB + n = x[n, t].
    x_dense = x_ref[...]                                  # (NB, L*D) f32
    x = jnp.concatenate(
        [x_dense[:, t * D:(t + 1) * D] for t in range(L)], axis=0)   # (M, D)

    # Row r represents (t = r // NB, n = r % NB).  Boundary masks neutralize
    # the circular rolls at sample edges and implement zero 'same' padding.
    r = jax.lax.broadcasted_iota(jnp.int32, (M, 1), 0)
    has_left = r >= NB              # t > 0
    has_right = r < (M - NB)        # t < L - 1

    def conv_relu(h, w_ref, b_ref):
        # h: (M, Cin) f32; w_ref: (3*Cin, Cout) bf16 packed [prev; cur; next].
        h_prev = jnp.where(has_left, jnp.roll(h, NB, axis=0), 0.0)
        h_next = jnp.where(has_right, jnp.roll(h, -NB, axis=0), 0.0)
        taps = jnp.concatenate(
            [h_prev.astype(jnp.bfloat16),
             h.astype(jnp.bfloat16),
             h_next.astype(jnp.bfloat16)], axis=1)        # (M, 3*Cin) bf16
        y = jnp.dot(taps, w_ref[...], preferred_element_type=jnp.float32)
        return jnp.maximum(y + b_ref[...], 0.0)

    h1 = conv_relu(x, w1_ref, b1_ref)      # (M, 128)
    h2 = conv_relu(h1, w2_ref, b2_ref)     # (M, 64)
    h3 = conv_relu(h2, w3_ref, b3_ref)     # (M, 64)

    # Per-sample global max pool over the sequence: (M, C) -> (L, NB, C) is a
    # free leading-dim split in t-major order; max over t is elementwise.
    p1 = jnp.max(h1.reshape(L, NB, CH[0]), axis=0)   # (NB, 128)
    p2 = jnp.max(h2.reshape(L, NB, CH[1]), axis=0)   # (NB, 64)
    p3 = jnp.max(h3.reshape(L, NB, CH[2]), axis=0)   # (NB, 64)

    # Single aligned, lane-dense (NB, 256) store (== torch.cat(..., dim=1)).
    o_ref[...] = jnp.concatenate([p1, p2, p3], axis=1)


def _pack_params(params):
    """(K, Cin, Cout) f32 -> (K*Cin, Cout) bf16 packed [prev; cur; next]."""
    packed = []
    for w, b in params:
        k, ci, co = w.shape
        packed.append((w.reshape(k * ci, co).astype(jnp.bfloat16),
                       b.astype(jnp.float32)))
    return packed


def sentence_encoder_forward(x, params, *, block_n=256, vmem_limit_mb=48):
    """x: (B, context_num, L, D) f32 -> (B, context_num, 256) f32."""
    B, Cn, L, D = x.shape
    N = B * Cn
    (w1, b1), (w2, b2), (w3, b3) = _pack_params(params)

    # Block size over N: multiple of 8 (sublane tiling of the output block).
    NB = _round_up(min(block_n, N), 8)
    if N > 8:
        # Keep at least 2 grid steps so "parallel" can shard across the two
        # TensorCores on v7x (no effect on v5e / v6e).
        NB = min(NB, _round_up(-(-N // 2), 8))
    N_pad = _round_up(N, NB)

    # Lane-dense (N, L*D) layout; free reshape on contiguous HBM.
    x_flat = x.reshape(N, L * D)
    if N_pad != N:
        x_flat = jnp.pad(x_flat, ((0, N_pad - N), (0, 0)))

    kernel = functools.partial(sentence_encoder_kernel, L=L, D=D)

    out = pl.pallas_call(
        kernel,
        out_shape=jax.ShapeDtypeStruct((N_pad, OUT_DIM), jnp.float32),
        grid_spec=pltpu.PrefetchScalarGridSpec(
            num_scalar_prefetch=0,
            grid=(N_pad // NB,),
            in_specs=[
                pl.BlockSpec((NB, L * D), lambda n: (n, 0)),
                pl.BlockSpec(w1.shape, lambda n: (0, 0)),
                pl.BlockSpec(b1.shape, lambda n: (0, 0)),
                pl.BlockSpec(w2.shape, lambda n: (0, 0)),
                pl.BlockSpec(b2.shape, lambda n: (0, 0)),
                pl.BlockSpec(w3.shape, lambda n: (0, 0)),
                pl.BlockSpec(b3.shape, lambda n: (0, 0)),
            ],
            out_specs=pl.BlockSpec((NB, OUT_DIM), lambda n: (n, 0)),
        ),
        compiler_params=pltpu.CompilerParams(
            dimension_semantics=("parallel",),
            vmem_limit_bytes=vmem_limit_mb * 1024 * 1024),
    )(x_flat, w1, b1, w2, b2, w3, b3)

    return out[:N].reshape(B, Cn, OUT_DIM)


def init_params(key, input_dim):
    """Deterministic PyTorch-Conv1d-like uniform init, stored as (K, Cin, Cout) f32."""
    channels = [(input_dim, CH[0]), (CH[0], CH[1]), (CH[1], CH[2])]
    params = []
    for i, (ci, co) in enumerate(channels):
        kw, kb = jax.random.split(jax.random.fold_in(key, i))
        bound = 1.0 / float(ci * KERNEL) ** 0.5
        w = jax.random.uniform(kw, (KERNEL, ci, co), jnp.float32, -bound, bound)
        b = jax.random.uniform(kb, (1, co), jnp.float32, -bound, bound)
        params.append((w, b))
    return params


def ref_forward(x, params):
    """Pure-JAX f32 reference matching the PyTorch forward semantics."""
    B, Cn, L, D = x.shape
    h = x.reshape(B * Cn, L, D)
    outs = []
    for w, b in params:
        hp = jnp.pad(h, ((0, 0), (1, 1), (0, 0)))
        y = sum(jnp.einsum('nlc,cd->nld', hp[:, k:k + L, :], w[k])
                for k in range(KERNEL)) + b
        h = jnp.maximum(y, 0.0)
        outs.append(jnp.max(h, axis=1))
    return jnp.concatenate(outs, axis=-1).reshape(B, Cn, -1)


if __name__ == "__main__":
    key = jax.random.PRNGKey(0)
    kx, kx2, kp = jax.random.split(key, 3)

    B, Cn, L, D = 2, 3, 8, 16          # batch, context_num, max_seq_len, input_dim
    x = jax.random.normal(kx, (B, Cn, L, D), jnp.float32)
    params = init_params(kp, D)

    out = jax.block_until_ready(sentence_encoder_forward(x, params))
    ref = ref_forward(x, params)
    assert out.shape == (B, Cn, OUT_DIM), out.shape
    # bf16 MXU operands -> relaxed tolerance vs the f32 reference.
    assert jnp.allclose(out, ref, atol=2e-2, rtol=2e-2), \
        float(jnp.max(jnp.abs(out - ref)))

    # Exercise the multi-step blocked grid + N-padding path (N=21, NB=8 -> 3 steps).
    B2, Cn2 = 3, 7
    x2 = jax.random.normal(kx2, (B2, Cn2, L, D), jnp.float32)
    out2 = jax.block_until_ready(
        sentence_encoder_forward(x2, params, block_n=8))
    ref2 = ref_forward(x2, params)
    assert out2.shape == (B2, Cn2, OUT_DIM), out2.shape
    assert jnp.allclose(out2, ref2, atol=2e-2, rtol=2e-2), \
        float(jnp.max(jnp.abs(out2 - ref2)))

    print("KERNEL_OK")
</pallas_src>

<mosaic_0001>
module attributes {stable_mosaic.version = 11 : i64} {
  func.func @sentence_encoder_kernel(%arg0: i32, %arg1: memref<8x128xf32, #tpu.memory_space<vmem>>, %arg2: memref<48x128xbf16, #tpu.memory_space<vmem>>, %arg3: memref<1x128xf32, #tpu.memory_space<vmem>>, %arg4: memref<384x64xbf16, #tpu.memory_space<vmem>>, %arg5: memref<1x64xf32, #tpu.memory_space<vmem>>, %arg6: memref<192x64xbf16, #tpu.memory_space<vmem>>, %arg7: memref<1x64xf32, #tpu.memory_space<vmem>>, %arg8: memref<8x256xf32, #tpu.memory_space<vmem>>) attributes {dimension_semantics = [#tpu.dimension_semantics<parallel>], iteration_bounds = array<i64: 1>, scalar_prefetch = 0 : i64, scratch_operands = 0 : i64, tpu.core_type = #tpu.core_type<tc>, window_params = [{transform_indices = @transform_0, window_bounds = array<i64: 8, 128>}, {pipeline_mode = #tpu.pipeline_mode<synchronous>, transform_indices = @transform_1, window_bounds = array<i64: 48, 128>}, {pipeline_mode = #tpu.pipeline_mode<synchronous>, transform_indices = @transform_2, window_bounds = array<i64: 1, 128>}, {pipeline_mode = #tpu.pipeline_mode<synchronous>, transform_indices = @transform_3, window_bounds = array<i64: 384, 64>}, {pipeline_mode = #tpu.pipeline_mode<synchronous>, transform_indices = @transform_4, window_bounds = array<i64: 1, 64>}, {pipeline_mode = #tpu.pipeline_mode<synchronous>, transform_indices = @transform_5, window_bounds = array<i64: 192, 64>}, {pipeline_mode = #tpu.pipeline_mode<synchronous>, transform_indices = @transform_6, window_bounds = array<i64: 1, 64>}, {transform_indices = @transform_7, window_bounds = array<i64: 8, 256>}]} {
    %c0 = arith.constant 0 : index
    %c0_0 = arith.constant 0 : index
    %0 = vector.load %arg1[%c0, %c0_0] : memref<8x128xf32, #tpu.memory_space<vmem>>, vector<8x128xf32>
    %1 = vector.extract_strided_slice %0 {offsets = [0, 0], sizes = [8, 16], strides = [1, 1]} : vector<8x128xf32> to vector<8x16xf32>
    %2 = vector.extract_strided_slice %0 {offsets = [0, 16], sizes = [8, 16], strides = [1, 1]} : vector<8x128xf32> to vector<8x16xf32>
    %3 = vector.extract_strided_slice %0 {offsets = [0, 32], sizes = [8, 16], strides = [1, 1]} : vector<8x128xf32> to vector<8x16xf32>
    %4 = vector.extract_strided_slice %0 {offsets = [0, 48], sizes = [8, 16], strides = [1, 1]} : vector<8x128xf32> to vector<8x16xf32>
    %5 = vector.extract_strided_slice %0 {offsets = [0, 64], sizes = [8, 16], strides = [1, 1]} : vector<8x128xf32> to vector<8x16xf32>
    %6 = vector.extract_strided_slice %0 {offsets = [0, 80], sizes = [8, 16], strides = [1, 1]} : vector<8x128xf32> to vector<8x16xf32>
    %7 = vector.extract_strided_slice %0 {offsets = [0, 96], sizes = [8, 16], strides = [1, 1]} : vector<8x128xf32> to vector<8x16xf32>
    %8 = vector.extract_strided_slice %0 {offsets = [0, 112], sizes = [8, 16], strides = [1, 1]} : vector<8x128xf32> to vector<8x16xf32>
    %9 = tpu.concatenate %1, %2, %3, %4, %5, %6, %7, %8 in 0 : vector<8x16xf32>, vector<8x16xf32>, vector<8x16xf32>, vector<8x16xf32>, vector<8x16xf32>, vector<8x16xf32>, vector<8x16xf32>, vector<8x16xf32> -> vector<64x16xf32>
    %10 = tpu.iota {dimensions = array<i32: 0>} : vector<64x1xi32>
    %c8_i32 = arith.constant 8 : i32
    %11 = vector.broadcast %c8_i32 : i32 to vector<64x1xi32>
    %12 = arith.cmpi sge, %10, %11 : vector<64x1xi32>
    %c56_i32 = arith.constant 56 : i32
    %13 = vector.broadcast %c56_i32 : i32 to vector<64x1xi32>
    %14 = arith.cmpi slt, %10, %13 : vector<64x1xi32>
    %15 = vector.extract_strided_slice %9 {offsets = [56, 0], sizes = [8, 16], strides = [1, 1]} : vector<64x16xf32> to vector<8x16xf32>
    %16 = vector.extract_strided_slice %9 {offsets = [0, 0], sizes = [56, 16], strides = [1, 1]} : vector<64x16xf32> to vector<56x16xf32>
    %17 = tpu.concatenate %15, %16 in 0 : vector<8x16xf32>, vector<56x16xf32> -> vector<64x16xf32>
    %cst = arith.constant 0.000000e+00 : f32
    %18 = vector.shape_cast %12 : vector<64x1xi1> to vector<64x1xi1>
    %19 = vector.broadcast %18 : vector<64x1xi1> to vector<64x16xi1>
    %20 = vector.broadcast %cst : f32 to vector<64x16xf32>
    %21 = arith.select %19, %17, %20 : vector<64x16xi1>, vector<64x16xf32>
    %22 = vector.extract_strided_slice %9 {offsets = [8, 0], sizes = [56, 16], strides = [1, 1]} : vector<64x16xf32> to vector<56x16xf32>
    %23 = vector.extract_strided_slice %9 {offsets = [0, 0], sizes = [8, 16], strides = [1, 1]} : vector<64x16xf32> to vector<8x16xf32>
    %24 = tpu.concatenate %22, %23 in 0 : vector<56x16xf32>, vector<8x16xf32> -> vector<64x16xf32>
    %cst_1 = arith.constant 0.000000e+00 : f32
    %25 = vector.shape_cast %14 : vector<64x1xi1> to vector<64x1xi1>
    %26 = vector.broadcast %25 : vector<64x1xi1> to vector<64x16xi1>
    %27 = vector.broadcast %cst_1 : f32 to vector<64x16xf32>
    %28 = arith.select %26, %24, %27 : vector<64x16xi1>, vector<64x16xf32>
    %29 = arith.truncf %21 : vector<64x16xf32> to vector<64x16xbf16>
    %30 = arith.truncf %9 : vector<64x16xf32> to vector<64x16xbf16>
    %31 = arith.truncf %28 : vector<64x16xf32> to vector<64x16xbf16>
    %32 = tpu.concatenate %29, %30, %31 in 1 : vector<64x16xbf16>, vector<64x16xbf16>, vector<64x16xbf16> -> vector<64x48xbf16>
    %c0_2 = arith.constant 0 : index
    %c0_3 = arith.constant 0 : index
    %33 = vector.load %arg2[%c0_2, %c0_3] : memref<48x128xbf16, #tpu.memory_space<vmem>>, vector<48x128xbf16>
    %cst_4 = arith.constant dense<0.000000e+00> : vector<64x128xf32>
    %34 = tpu.matmul %32, %33, %cst_4 {dimension_numbers = #tpu.dot_dimension_numbers<[1], [0], [0], [1], [0, 0, 1, 1], [], []>} : vector<64x48xbf16>, vector<48x128xbf16>, vector<64x128xf32> -> vector<64x128xf32>
    %c0_5 = arith.constant 0 : index
    %c0_6 = arith.constant 0 : index
    %35 = vector.load %arg3[%c0_5, %c0_6] : memref<1x128xf32, #tpu.memory_space<vmem>>, vector<1x128xf32>
    %36 = vector.broadcast %35 : vector<1x128xf32> to vector<64x128xf32>
    %37 = arith.addf %34, %36 : vector<64x128xf32>
    %cst_7 = arith.constant 0.000000e+00 : f32
    %38 = vector.broadcast %cst_7 : f32 to vector<64x128xf32>
    %39 = arith.maximumf %37, %38 : vector<64x128xf32>
    %40 = vector.extract_strided_slice %39 {offsets = [56, 0], sizes = [8, 128], strides = [1, 1]} : vector<64x128xf32> to vector<8x128xf32>
    %41 = vector.extract_strided_slice %39 {offsets = [0, 0], sizes = [56, 128], strides = [1, 1]} : vector<64x128xf32> to vector<56x128xf32>
    %42 = tpu.concatenate %40, %41 in 0 : vector<8x128xf32>, vector<56x128xf32> -> vector<64x128xf32>
    %cst_8 = arith.constant 0.000000e+00 : f32
    %43 = vector.shape_cast %12 : vector<64x1xi1> to vector<64x1xi1>
    %44 = vector.broadcast %43 : vector<64x1xi1> to vector<64x128xi1>
    %45 = vector.broadcast %cst_8 : f32 to vector<64x128xf32>
    %46 = arith.select %44, %42, %45 : vector<64x128xi1>, vector<64x128xf32>
    %47 = vector.extract_strided_slice %39 {offsets = [8, 0], sizes = [56, 128], strides = [1, 1]} : vector<64x128xf32> to vector<56x128xf32>
    %48 = vector.extract_strided_slice %39 {offsets = [0, 0], sizes = [8, 128], strides = [1, 1]} : vector<64x128xf32> to vector<8x128xf32>
    %49 = tpu.concatenate %47, %48 in 0 : vector<56x128xf32>, vector<8x128xf32> -> vector<64x128xf32>
    %cst_9 = arith.constant 0.000000e+00 : f32
    %50 = vector.shape_cast %14 : vector<64x1xi1> to vector<64x1xi1>
    %51 = vector.broadcast %50 : vector<64x1xi1> to vector<64x128xi1>
    %52 = vector.broadcast %cst_9 : f32 to vector<64x128xf32>
    %53 = arith.select %51, %49, %52 : vector<64x128xi1>, vector<64x128xf32>
    %54 = arith.truncf %46 : vector<64x128xf32> to vector<64x128xbf16>
    %55 = arith.truncf %39 : vector<64x128xf32> to vector<64x128xbf16>
    %56 = arith.truncf %53 : vector<64x128xf32> to vector<64x128xbf16>
    %57 = tpu.concatenate %54, %55, %56 in 1 : vector<64x128xbf16>, vector<64x128xbf16>, vector<64x128xbf16> -> vector<64x384xbf16>
    %c0_10 = arith.constant 0 : index
    %c0_11 = arith.constant 0 : index
    %58 = vector.load %arg4[%c0_10, %c0_11] : memref<384x64xbf16, #tpu.memory_space<vmem>>, vector<384x64xbf16>
    %cst_12 = arith.constant dense<0.000000e+00> : vector<64x64xf32>
    %59 = tpu.matmul %57, %58, %cst_12 {dimension_numbers = #tpu.dot_dimension_numbers<[1], [0], [0], [1], [0, 0, 1, 1], [], []>} : vector<64x384xbf16>, vector<384x64xbf16>, vector<64x64xf32> -> vector<64x64xf32>
    %c0_13 = arith.constant 0 : index
    %c0_14 = arith.constant 0 : index
    %60 = vector.load %arg5[%c0_13, %c0_14] : memref<1x64xf32, #tpu.memory_space<vmem>>, vector<1x64xf32>
    %61 = vector.broadcast %60 : vector<1x64xf32> to vector<64x64xf32>
    %62 = arith.addf %59, %61 : vector<64x64xf32>
    %cst_15 = arith.constant 0.000000e+00 : f32
    %63 = vector.broadcast %cst_15 : f32 to vector<64x64xf32>
    %64 = arith.maximumf %62, %63 : vector<64x64xf32>
    %65 = vector.extract_strided_slice %64 {offsets = [56, 0], sizes = [8, 64], strides = [1, 1]} : vector<64x64xf32> to vector<8x64xf32>
    %66 = vector.extract_strided_slice %64 {offsets = [0, 0], sizes = [56, 64], strides = [1, 1]} : vector<64x64xf32> to vector<56x64xf32>
    %67 = tpu.concatenate %65, %66 in 0 : vector<8x64xf32>, vector<56x64xf32> -> vector<64x64xf32>
    %cst_16 = arith.constant 0.000000e+00 : f32
    %68 = vector.shape_cast %12 : vector<64x1xi1> to vector<64x1xi1>
    %69 = vector.broadcast %68 : vector<64x1xi1> to vector<64x64xi1>
    %70 = vector.broadcast %cst_16 : f32 to vector<64x64xf32>
    %71 = arith.select %69, %67, %70 : vector<64x64xi1>, vector<64x64xf32>
    %72 = vector.extract_strided_slice %64 {offsets = [8, 0], sizes = [56, 64], strides = [1, 1]} : vector<64x64xf32> to vector<56x64xf32>
    %73 = vector.extract_strided_slice %64 {offsets = [0, 0], sizes = [8, 64], strides = [1, 1]} : vector<64x64xf32> to vector<8x64xf32>
    %74 = tpu.concatenate %72, %73 in 0 : vector<56x64xf32>, vector<8x64xf32> -> vector<64x64xf32>
    %cst_17 = arith.constant 0.000000e+00 : f32
    %75 = vector.shape_cast %14 : vector<64x1xi1> to vector<64x1xi1>
    %76 = vector.broadcast %75 : vector<64x1xi1> to vector<64x64xi1>
    %77 = vector.broadcast %cst_17 : f32 to vector<64x64xf32>
    %78 = arith.select %76, %74, %77 : vector<64x64xi1>, vector<64x64xf32>
    %79 = arith.truncf %71 : vector<64x64xf32> to vector<64x64xbf16>
    %80 = arith.truncf %64 : vector<64x64xf32> to vector<64x64xbf16>
    %81 = arith.truncf %78 : vector<64x64xf32> to vector<64x64xbf16>
    %82 = tpu.concatenate %79, %80, %81 in 1 : vector<64x64xbf16>, vector<64x64xbf16>, vector<64x64xbf16> -> vector<64x192xbf16>
    %c0_18 = arith.constant 0 : index
    %c0_19 = arith.constant 0 : index
    %83 = vector.load %arg6[%c0_18, %c0_19] : memref<192x64xbf16, #tpu.memory_space<vmem>>, vector<192x64xbf16>
    %cst_20 = arith.constant dense<0.000000e+00> : vector<64x64xf32>
    %84 = tpu.matmul %82, %83, %cst_20 {dimension_numbers = #tpu.dot_dimension_numbers<[1], [0], [0], [1], [0, 0, 1, 1], [], []>} : vector<64x192xbf16>, vector<192x64xbf16>, vector<64x64xf32> -> vector<64x64xf32>
    %c0_21 = arith.constant 0 : index
    %c0_22 = arith.constant 0 : index
    %85 = vector.load %arg7[%c0_21, %c0_22] : memref<1x64xf32, #tpu.memory_space<vmem>>, vector<1x64xf32>
    %86 = vector.broadcast %85 : vector<1x64xf32> to vector<64x64xf32>
    %87 = arith.addf %84, %86 : vector<64x64xf32>
    %cst_23 = arith.constant 0.000000e+00 : f32
    %88 = vector.broadcast %cst_23 : f32 to vector<64x64xf32>
    %89 = arith.maximumf %87, %88 : vector<64x64xf32>
    %90 = vector.shape_cast %39 : vector<64x128xf32> to vector<8x8x128xf32>
    %cst_24 = arith.constant dense<0xFF800000> : vector<8x128xf32>
    %91 = vector.multi_reduction <maximumf>, %90, %cst_24 [0] : vector<8x8x128xf32> to vector<8x128xf32>
    %92 = vector.shape_cast %64 : vector<64x64xf32> to vector<8x8x64xf32>
    %cst_25 = arith.constant dense<0xFF800000> : vector<8x64xf32>
    %93 = vector.multi_reduction <maximumf>, %92, %cst_25 [0] : vector<8x8x64xf32> to vector<8x64xf32>
    %94 = vector.shape_cast %89 : vector<64x64xf32> to vector<8x8x64xf32>
    %cst_26 = arith.constant dense<0xFF800000> : vector<8x64xf32>
    %95 = vector.multi_reduction <maximumf>, %94, %cst_26 [0] : vector<8x8x64xf32> to vector<8x64xf32>
    %96 = tpu.concatenate %91, %93, %95 in 1 : vector<8x128xf32>, vector<8x64xf32>, vector<8x64xf32> -> vector<8x256xf32>
    %c0_27 = arith.constant 0 : index
    %c0_28 = arith.constant 0 : index
    %97 = vector.load %arg8[%c0_27, %c0_28] : memref<8x256xf32, #tpu.memory_space<vmem>>, vector<8x256xf32>
    tpu.vector_store %arg8[%c0_27, %c0_28], %96 {strides = array<i32>} : memref<8x256xf32, #tpu.memory_space<vmem>>, vector<8x256xf32>,
    return
  }
  func.func @transform_0(%arg0: i32) -> (i32, i32) {
    %c0_i32 = arith.constant 0 : i32
    %c0_i32_0 = arith.constant 0 : i32
    return %arg0, %c0_i32 : i32, i32
  }
  func.func @transform_1(%arg0: i32) -> (i32, i32) {
    %c0_i32 = arith.constant 0 : i32
    %c0_i32_0 = arith.constant 0 : i32
    %c0_i32_1 = arith.constant 0 : i32
    return %c0_i32, %c0_i32_0 : i32, i32
  }
  func.func @transform_2(%arg0: i32) -> (i32, i32) {
    %c0_i32 = arith.constant 0 : i32
    %c0_i32_0 = arith.constant 0 : i32
    %c0_i32_1 = arith.constant 0 : i32
    return %c0_i32, %c0_i32_0 : i32, i32
  }
  func.func @transform_3(%arg0: i32) -> (i32, i32) {
    %c0_i32 = arith.constant 0 : i32
    %c0_i32_0 = arith.constant 0 : i32
    %c0_i32_1 = arith.constant 0 : i32
    return %c0_i32, %c0_i32_0 : i32, i32
  }
  func.func @transform_4(%arg0: i32) -> (i32, i32) {
    %c0_i32 = arith.constant 0 : i32
    %c0_i32_0 = arith.constant 0 : i32
    %c0_i32_1 = arith.constant 0 : i32
    return %c0_i32, %c0_i32_0 : i32, i32
  }
  func.func @transform_5(%arg0: i32) -> (i32, i32) {
    %c0_i32 = arith.constant 0 : i32
    %c0_i32_0 = arith.constant 0 : i32
    %c0_i32_1 = arith.constant 0 : i32
    return %c0_i32, %c0_i32_0 : i32, i32
  }
  func.func @transform_6(%arg0: i32) -> (i32, i32) {
    %c0_i32 = arith.constant 0 : i32
    %c0_i32_0 = arith.constant 0 : i32
    %c0_i32_1 = arith.constant 0 : i32
    return %c0_i32, %c0_i32_0 : i32, i32
  }
  func.func @transform_7(%arg0: i32) -> (i32, i32) {
    %c0_i32 = arith.constant 0 : i32
    %c0_i32_0 = arith.constant 0 : i32
    return %arg0, %c0_i32 : i32, i32
  }
}

</mosaic_0001>

<llo_original>
// kernel: tpu_custom_call.1
$region0: #{tpu_custom_call.1}
  #allocation0 [shape = 'u32[]', space=smem, size = 0x4, offset = 0x4, fixed_abs, tag = 'smem constant byte address 0x4 - core index']
  #allocation1 [shape = 'u32[144,128]{1,0:T(1,128)}', space=vmem, size = 0x12000, scoped, tag = 'internal scratch']
  %s0 = inlined_call_operand.vmem [shape: f32[8,128], index: 0, kind: input, shape index: {}]
  %s1 = inlined_call_operand.vmem [shape: bf16[48,128], index: 1, kind: input, shape index: {}]
  %s2 = inlined_call_operand.vmem [shape: f32[1,128], index: 2, kind: input, shape index: {}]
  %s3 = inlined_call_operand.vmem [shape: bf16[384,64], index: 3, kind: input, shape index: {}]
  %s4 = inlined_call_operand.vmem [shape: f32[1,64], index: 4, kind: input, shape index: {}]
  %s5 = inlined_call_operand.vmem [shape: bf16[192,64], index: 5, kind: input, shape index: {}]
  %s6 = inlined_call_operand.vmem [shape: f32[1,64], index: 6, kind: input, shape index: {}]
  %s7 = inlined_call_operand.hbm [shape: f32[8,256], index: 7, kind: output, shape index: {}]
  %s8 = sld [smem:[#allocation0]]
  $region38: #{tpu_custom_call.1} parent=0
    _
  %s10 = ssub.s32 1, %s8
  %s11 = scalar_select 0, %s10, %s8
  $region1: #{tpu_custom_call.1} parent=0
    #allocation2 [shape = 'u8[8192]{0}', space=vmem, size = 0x2000, scoped, tag = 'output window, operand 0, single buffered']
    #allocation3 [shape = 's32[1]{0}', space=sflag, size = 0x4, scoped, tag = 'scoped memory for tpu_custom_call.1']
    %12 = vsyncpa [#allocation3], 0
    // Predicated region
    $region2: #{tpu_custom_call.1} parent=1 // pred_check
      _
    $region3: #{tpu_custom_call.1} parent=1 // pred_check_branch
      %14 = sbr.rel (0) target = $region5
    $region4: #{tpu_custom_call.1} parent=1 // pred_region
      _
    $region5: #{tpu_custom_call.1} parent=1 // pred_fallthru
      _
    // Predicated region
    $region6: #{tpu_custom_call.1} parent=1 // pred_check
      _
    $region7: #{tpu_custom_call.1} parent=1 // pred_check_branch
      %16 = sbr.rel (0) target = $region9
    $region8: #{tpu_custom_call.1} parent=1 // pred_region
      _
    $region9: #{tpu_custom_call.1} parent=1 // pred_fallthru
      _
    // Predicated region
    $region10: #{tpu_custom_call.1} parent=1 // pred_check
      _
    $region11: #{tpu_custom_call.1} parent=1 // pred_check_branch
      %18 = sbr.rel (0) target = $region13
    $region12: #{tpu_custom_call.1} parent=1 // pred_region
      _
    $region13: #{tpu_custom_call.1} parent=1 // pred_fallthru
      _
    // Predicated region
    $region14: #{tpu_custom_call.1} parent=1 // pred_check
      _
    $region15: #{tpu_custom_call.1} parent=1 // pred_check_branch
      %20 = sbr.rel (0) target = $region17
    $region16: #{tpu_custom_call.1} parent=1 // pred_region
      _
    $region17: #{tpu_custom_call.1} parent=1 // pred_fallthru
      _
    // Predicated region
    $region18: #{tpu_custom_call.1} parent=1 // pred_check
      _
    $region19: #{tpu_custom_call.1} parent=1 // pred_check_branch
      %22 = sbr.rel (0) target = $region21
    $region20: #{tpu_custom_call.1} parent=1 // pred_region
      _
    $region21: #{tpu_custom_call.1} parent=1 // pred_fallthru
      _
    // Predicated region
    $region22: #{tpu_custom_call.1} parent=1 // pred_check
      _
    $region23: #{tpu_custom_call.1} parent=1 // pred_check_branch
      %24 = sbr.rel (0) target = $region25
    $region24: #{tpu_custom_call.1} parent=1 // pred_region
      _
    $region25: #{tpu_custom_call.1} parent=1 // pred_fallthru
      _
    // Predicated region
    $region26: #{tpu_custom_call.1} parent=1 // pred_check
      _
    $region27: #{tpu_custom_call.1} parent=1 // pred_check_branch
      %26 = sbr.rel (0) target = $region29
    $region28: #{tpu_custom_call.1} parent=1 // pred_region
      _
    $region29: #{tpu_custom_call.1} parent=1 // pred_fallthru
      _
    %v28 = vld [vmem:[%s0] sm:$0xff]
    %30 = vrot.lane.b32.xlu0 %v28, 112
    %v31 = vpop.permute.xlu0 %30
    %33 = vrot.lane.b32.xlu0 %v28, 96
    %v34 = vpop.permute.xlu0 %33
    %36 = vrot.lane.b32.xlu0 %v28, 80
    %v37 = vpop.permute.xlu0 %36
    %39 = vrot.lane.b32.xlu0 %v28, 64
    %v40 = vpop.permute.xlu0 %39
    %42 = vrot.lane.b32.xlu0 %v28, 48
    %v43 = vpop.permute.xlu0 %42
    %45 = vrot.lane.b32.xlu0 %v28, 32
    %v46 = vpop.permute.xlu0 %45
    %48 = vrot.lane.b32.xlu0 %v28, 16
    %v49 = vpop.permute.xlu0 %48
    %v51 = vlaneseq
    %v52 = vshrl.u32 %v51, 7
    %v53 = vadd.s32 %v52, 8
    %v54 = vadd.s32 %v52, 16
    %v55 = vadd.s32 %v52, 24
    %v56 = vadd.s32 %v52, 32
    %v57 = vadd.s32 %v52, 40
    %v58 = vadd.s32 %v52, 48
    %v59 = vadd.s32 %v52, 56
    %vm60 = vcmp.ge.s32.totalorder %v52, 8
    %vm61 = vcmp.ge.s32.totalorder %v53, 8
    %vm62 = vcmp.ge.s32.totalorder %v54, 8
    %vm63 = vcmp.ge.s32.totalorder %v55, 8
    %vm64 = vcmp.ge.s32.totalorder %v56, 8
    %vm65 = vcmp.ge.s32.totalorder %v57, 8
    %vm66 = vcmp.ge.s32.totalorder %v58, 8
    %vm67 = vcmp.ge.s32.totalorder %v59, 8
    %vm68 = vcmp.lt.s32.totalorder %v52, 56
    %vm69 = vcmp.lt.s32.totalorder %v53, 56
    %vm70 = vcmp.lt.s32.totalorder %v54, 56
    %vm71 = vcmp.lt.s32.totalorder %v55, 56
    %vm72 = vcmp.lt.s32.totalorder %v56, 56
    %vm73 = vcmp.lt.s32.totalorder %v57, 56
    %vm74 = vcmp.lt.s32.totalorder %v58, 56
    %vm75 = vcmp.lt.s32.totalorder %v59, 56
    %v76 = vsel %vm60, 1, 0
    %v77 = vsel %vm61, 1, 0
    %v78 = vsel %vm62, 1, 0
    %v79 = vsel %vm63, 1, 0
    %v80 = vsel %vm64, 1, 0
    %v81 = vsel %vm65, 1, 0
    %v82 = vsel %vm66, 1, 0
    %v83 = vsel %vm67, 1, 0
    %vm84 = vcmp.eq.s32.totalorder %v76, 1
    %vm85 = vcmp.eq.s32.totalorder %v77, 1
    %vm86 = vcmp.eq.s32.totalorder %v78, 1
    %vm87 = vcmp.eq.s32.totalorder %v79, 1
    %vm88 = vcmp.eq.s32.totalorder %v80, 1
    %vm89 = vcmp.eq.s32.totalorder %v81, 1
    %vm90 = vcmp.eq.s32.totalorder %v82, 1
    %vm91 = vcmp.eq.s32.totalorder %v83, 1
    %v92 = vsel %vm84, %v49, 0.0
    %v93 = vsel %vm85, %v28, 0.0
    %v94 = vsel %vm86, %v31, 0.0
    %v95 = vsel %vm87, %v34, 0.0
    %v96 = vsel %vm88, %v37, 0.0
    %v97 = vsel %vm89, %v40, 0.0
    %v98 = vsel %vm90, %v43, 0.0
    %v99 = vsel %vm91, %v46, 0.0
    %v100 = vsel %vm68, 1, 0
    %v101 = vsel %vm69, 1, 0
    %v102 = vsel %vm70, 1, 0
    %v103 = vsel %vm71, 1, 0
    %v104 = vsel %vm72, 1, 0
    %v105 = vsel %vm73, 1, 0
    %v106 = vsel %vm74, 1, 0
    %v107 = vsel %vm75, 1, 0
    %vm108 = vcmp.eq.s32.totalorder %v100, 1
    %vm109 = vcmp.eq.s32.totalorder %v101, 1
    %vm110 = vcmp.eq.s32.totalorder %v102, 1
    %vm111 = vcmp.eq.s32.totalorder %v103, 1
    %vm112 = vcmp.eq.s32.totalorder %v104, 1
    %vm113 = vcmp.eq.s32.totalorder %v105, 1
    %vm114 = vcmp.eq.s32.totalorder %v106, 1
    %vm115 = vcmp.eq.s32.totalorder %v107, 1
    %v116 = vsel %vm108, %v31, 0.0
    %v117 = vsel %vm109, %v34, 0.0
    %v118 = vsel %vm110, %v37, 0.0
    %v119 = vsel %vm111, %v40, 0.0
    %v120 = vsel %vm112, %v43, 0.0
    %v121 = vsel %vm113, %v46, 0.0
    %v122 = vsel %vm114, %v49, 0.0
    %v123 = vsel %vm115, %v28, 0.0
    %v124 = vpack.c.bf16 %v93, %v92
    %v125 = vpack.c.bf16 %v95, %v94
    %v126 = vpack.c.bf16 %v97, %v96
    %v127 = vpack.c.bf16 %v99, %v98
    %v128 = vpack.c.bf16 %v31, %v28
    %v129 = vpack.c.bf16 %v37, %v34
    %v130 = vpack.c.bf16 %v43, %v40
    %v131 = vpack.c.bf16 %v49, %v46
    %v132 = vpack.c.bf16 %v117, %v116
    %v133 = vpack.c.bf16 %v119, %v118
    %v134 = vpack.c.bf16 %v121, %v120
    %v135 = vpack.c.bf16 %v123, %v122
    %140 = vrot.lane.b32.xlu0 %v128, 16
    %v141 = vpop.permute.xlu0 %140
    %142 = vrot.lane.b32.xlu0 %v129, 16
    %v143 = vpop.permute.xlu0 %142
    %144 = vrot.lane.b32.xlu0 %v130, 16
    %v145 = vpop.permute.xlu0 %144
    %146 = vrot.lane.b32.xlu0 %v131, 16
    %v147 = vpop.permute.xlu0 %146
    %152 = vrot.lane.b32.xlu0 %v132, 32
    %v153 = vpop.permute.xlu0 %152
    %154 = vrot.lane.b32.xlu0 %v133, 32
    %v155 = vpop.permute.xlu0 %154
    %156 = vrot.lane.b32.xlu0 %v134, 32
    %v157 = vpop.permute.xlu0 %156
    %158 = vrot.lane.b32.xlu0 %v135, 32
    %v159 = vpop.permute.xlu0 %158
    %vm160 = vcmask 130048
    %v163 = vsel %vm160, %v124, %v141
    %v166 = vsel %vm160, %v125, %v143
    %v169 = vsel %vm160, %v126, %v145
    %v172 = vsel %vm160, %v127, %v147
    %vm173 = vcmask 261120
    %v175 = vsel %vm173, %v163, %v153
    %v177 = vsel %vm173, %v166, %v155
    %v179 = vsel %vm173, %v169, %v157
    %v181 = vsel %vm173, %v172, %v159
    %v182 = vld [vmem:[%s1] sm:$0xf]
    %v183 = vld [vmem:[%s1 + $0x4] sm:$0xf]
    %v184 = vld [vmem:[%s1 + $0x8] sm:$0xf]
    %v185 = vld [vmem:[%s1 + $0xc] sm:$0xf]
    %v186 = vld [vmem:[%s1 + $0x10] sm:$0xf]
    %v187 = vld [vmem:[%s1 + $0x14] sm:$0xf]
    %v188 = vld [vmem:[%s2] sm:$0x1]
    %v190 = vlaneseq
    %v191 = vshrl.u32 %v190, 7
    %v192 = vsub.s32 0, %v191
    %v193 = vrot.slane %v188, %v192
    %v201 = vunpack.c.l.b16 %v182
    %v202 = vunpack.c.l.b16 %v183
    %v203 = vunpack.c.l.b16 %v184
    %v204 = vunpack.c.l.b16 %v185
    %v205 = vunpack.c.l.b16 %v186
    %v206 = vunpack.c.l.b16 %v187
    %v207 = vpack.c.b16 %v202, %v201
    %v208 = vpack.c.b16 %v204, %v203
    %v209 = vpack.c.b16 %v206, %v205
    %vm213 = vcmask 392192
    %v214 = vsel %vm213, %v175, 0
    %v216 = vsel %vm213, %v177, 0
    %v218 = vsel %vm213, %v179, 0
    %v220 = vsel %vm213, %v181, 0
    %222 = vmatprep.subr.bf16.mxu0 0
    %223 = vmatpush1.bf16.msra.mxu0 %v207
    %224 = vmatprep.subr.bf16.mxu0 0
    %225 = vmatpush1.bf16.msra.mxu0 %v208
    %226 = vmatprep.subr.bf16.mxu0 0
    %227 = vmatpush1.bf16.msra.mxu0 %v209
    %228 = vmatprep.subr.bf16.mxu0 0
    %229 = vmatpush1.bf16.msra.mxu0 0
    %230 = vmatprep.subr.bf16.mxu0 0
    %231 = vmatpush1.bf16.msra.mxu0 0
    %232 = vmatprep.subr.bf16.mxu0 0
    %233 = vmatpush1.bf16.msra.mxu0 0
    %234 = vmatprep.subr.bf16.mxu0 0
    %235 = vmatpush1.bf16.msra.mxu0 0
    %236 = vmatprep.subr.bf16.mxu0 0
    %237 = vmatpush1.bf16.msra.mxu0 0
    %238 = vmatprep.subr.bf16.mxu0 0
    %239 = vmatpush1.bf16.msra.mxu0 0
    %240 = vmatprep.subr.bf16.mxu0 0
    %241 = vmatpush1.bf16.msra.mxu0 0
    %242 = vmatprep.subr.bf16.mxu0 0
    %243 = vmatpush1.bf16.msra.mxu0 0
    %244 = vmatprep.subr.bf16.mxu0 0
    %245 = vmatpush1.bf16.msra.mxu0 0
    %246 = vmatprep.subr.bf16.mxu0 0
    %247 = vmatpush1.bf16.msra.mxu0 0
    %248 = vmatprep.subr.bf16.mxu0 0
    %249 = vmatpush1.bf16.msra.mxu0 0
    %250 = vmatprep.subr.bf16.mxu0 0
    %251 = vmatpush1.bf16.msra.mxu0 0
    %252 = vmatprep.subr.bf16.mxu0 0
    %253 = vmatpush1.bf16.msra.mxu0 0
    %254 = vmatprep.mubr.bf16.mxu0 0
    %255 = vmatmul.mubr.bf16.gmra.mrb[0].mxu0 %v214
    %v256 = vpop.f32.mrb[0].mxu0
    %v257 = vadd.f32 %v193, %v256
    %v258 = vpop.f32.mrb[0].mxu0
    %v259 = vpop.f32.mrb[0].mxu0
    %v260 = vadd.f32 %v193, %v259
    %v261 = vpop.f32.mrb[0].mxu0
    %262 = vmatprep.mubr.bf16.mxu0 0
    %263 = vmatmul.mubr.bf16.gmra.mrb[0].mxu0 %v216
    %v264 = vpop.f32.mrb[0].mxu0
    %v265 = vadd.f32 %v193, %v264
    %v266 = vpop.f32.mrb[0].mxu0
    %v267 = vpop.f32.mrb[0].mxu0
    %v268 = vadd.f32 %v193, %v267
    %v269 = vpop.f32.mrb[0].mxu0
    %270 = vmatprep.mubr.bf16.mxu0 0
    %271 = vmatmul.mubr.bf16.gmra.mrb[0].mxu0 %v218
    %v272 = vpop.f32.mrb[0].mxu0
    %v273 = vadd.f32 %v193, %v272
    %v274 = vpop.f32.mrb[0].mxu0
    %v275 = vpop.f32.mrb[0].mxu0
    %v276 = vadd.f32 %v193, %v275
    %v277 = vpop.f32.mrb[0].mxu0
    %278 = vmatprep.mubr.bf16.mxu0 0
    %279 = vmatmul.mubr.bf16.gmra.mrb[0].mxu0 %v220
    %v280 = vpop.f32.mrb[0].mxu0
    %v281 = vadd.f32 %v193, %v280
    %v282 = vpop.f32.mrb[0].mxu0
    %v283 = vpop.f32.mrb[0].mxu0
    %v284 = vadd.f32 %v193, %v283
    %v285 = vpop.f32.mrb[0].mxu0
    %286 = vdwg.mxu0
    %v287 = vmax.f32 %v257, 0.0
    %v288 = vmax.f32 %v260, 0.0
    %v289 = vmax.f32 %v265, 0.0
    %v290 = vmax.f32 %v268, 0.0
    %v291 = vmax.f32 %v273, 0.0
    %v292 = vmax.f32 %v276, 0.0
    %v293 = vmax.f32 %v281, 0.0
    %v294 = vmax.f32 %v284, 0.0
    %v295 = vsel %vm84, %v294, 0.0
    %v296 = vsel %vm85, %v287, 0.0
    %v297 = vsel %vm86, %v288, 0.0
    %v298 = vsel %vm87, %v289, 0.0
    %v299 = vsel %vm88, %v290, 0.0
    %v300 = vsel %vm89, %v291, 0.0
    %v301 = vsel %vm90, %v292, 0.0
    %v302 = vsel %vm91, %v293, 0.0
    %v303 = vsel %vm108, %v288, 0.0
    %v304 = vsel %vm109, %v289, 0.0
    %v305 = vsel %vm110, %v290, 0.0
    %v306 = vsel %vm111, %v291, 0.0
    %v307 = vsel %vm112, %v292, 0.0
    %v308 = vsel %vm113, %v293, 0.0
    %v309 = vsel %vm114, %v294, 0.0
    %v310 = vsel %vm115, %v287, 0.0
    %v311 = vpack.c.bf16 %v296, %v295
    %v312 = vpack.c.bf16 %v298, %v297
    %v313 = vpack.c.bf16 %v300, %v299
    %v314 = vpack.c.bf16 %v302, %v301
    %v315 = vpack.c.bf16 %v288, %v287
    %v316 = vpack.c.bf16 %v290, %v289
    %v317 = vpack.c.bf16 %v292, %v291
    %v318 = vpack.c.bf16 %v294, %v293
    %v319 = vpack.c.bf16 %v304, %v303
    %v320 = vpack.c.bf16 %v306, %v305
    %v321 = vpack.c.bf16 %v308, %v307
    %v322 = vpack.c.bf16 %v310, %v309
    %v323 = vld [vmem:[%s3] sm:$0xf]
    %v324 = vld [vmem:[%s3 + $0x4] sm:$0xf]
    %v325 = vld [vmem:[%s3 + $0x8] sm:$0xf]
    %v326 = vld [vmem:[%s3 + $0xc] sm:$0xf]
    %v327 = vld [vmem:[%s3 + $0x10] sm:$0xf]
    %v328 = vld [vmem:[%s3 + $0x14] sm:$0xf]
    %v329 = vld [vmem:[%s3 + $0x18] sm:$0xf]
    %v330 = vld [vmem:[%s3 + $0x1c] sm:$0xf]
    %v331 = vld [vmem:[%s3 + $0x20] sm:$0xf]
    %v332 = vld [vmem:[%s3 + $0x24] sm:$0xf]
    %v333 = vld [vmem:[%s3 + $0x28] sm:$0xf]
    %v334 = vld [vmem:[%s3 + $0x2c] sm:$0xf]
    %v335 = vld [vmem:[%s3 + $0x30] sm:$0xf]
    %v336 = vld [vmem:[%s3 + $0x34] sm:$0xf]
    %v337 = vld [vmem:[%s3 + $0x38] sm:$0xf]
    %v338 = vld [vmem:[%s3 + $0x3c] sm:$0xf]
    %v339 = vld [vmem:[%s3 + $0x40] sm:$0xf]
    %v340 = vld [vmem:[%s3 + $0x44] sm:$0xf]
    %v341 = vld [vmem:[%s3 + $0x48] sm:$0xf]
    %v342 = vld [vmem:[%s3 + $0x4c] sm:$0xf]
    %v343 = vld [vmem:[%s3 + $0x50] sm:$0xf]
    %v344 = vld [vmem:[%s3 + $0x54] sm:$0xf]
    %v345 = vld [vmem:[%s3 + $0x58] sm:$0xf]
    %v346 = vld [vmem:[%s3 + $0x5c] sm:$0xf]
    %v347 = vld [vmem:[%s3 + $0x60] sm:$0xf]
    %v348 = vld [vmem:[%s3 + $0x64] sm:$0xf]
    %v349 = vld [vmem:[%s3 + $0x68] sm:$0xf]
    %v350 = vld [vmem:[%s3 + $0x6c] sm:$0xf]
    %v351 = vld [vmem:[%s3 + $0x70] sm:$0xf]
    %v352 = vld [vmem:[%s3 + $0x74] sm:$0xf]
    %v353 = vld [vmem:[%s3 + $0x78] sm:$0xf]
    %v354 = vld [vmem:[%s3 + $0x7c] sm:$0xf]
    %v355 = vld [vmem:[%s3 + $0x80] sm:$0xf]
    %v356 = vld [vmem:[%s3 + $0x84] sm:$0xf]
    %v357 = vld [vmem:[%s3 + $0x88] sm:$0xf]
    %v358 = vld [vmem:[%s3 + $0x8c] sm:$0xf]
    %v359 = vld [vmem:[%s3 + $0x90] sm:$0xf]
    %v360 = vld [vmem:[%s3 + $0x94] sm:$0xf]
    %v361 = vld [vmem:[%s3 + $0x98] sm:$0xf]
    %v362 = vld [vmem:[%s3 + $0x9c] sm:$0xf]
    %v363 = vld [vmem:[%s3 + $0xa0] sm:$0xf]
    %v364 = vld [vmem:[%s3 + $0xa4] sm:$0xf]
    %v365 = vld [vmem:[%s3 + $0xa8] sm:$0xf]
    %v366 = vld [vmem:[%s3 + $0xac] sm:$0xf]
    %v367 = vld [vmem:[%s3 + $0xb0] sm:$0xf]
    %v368 = vld [vmem:[%s3 + $0xb4] sm:$0xf]
    %v369 = vld [vmem:[%s3 + $0xb8] sm:$0xf]
    %v370 = vld [vmem:[%s3 + $0xbc] sm:$0xf]
    %v371 = vld [vmem:[%s4] sm:$0x1]
    %v373 = vlaneseq
    %v374 = vshrl.u32 %v373, 7
    %v375 = vsub.s32 0, %v374
    %v376 = vrot.slane %v371, %v375
    %v426 = vunpack.c.l.b16 %v323
    %v427 = vunpack.c.l.b16 %v324
    %v428 = vunpack.c.l.b16 %v325
    %v429 = vunpack.c.l.b16 %v326
    %v430 = vunpack.c.l.b16 %v327
    %v431 = vunpack.c.l.b16 %v328
    %v432 = vunpack.c.l.b16 %v329
    %v433 = vunpack.c.l.b16 %v330
    %v434 = vunpack.c.l.b16 %v331
    %v435 = vunpack.c.l.b16 %v332
    %v436 = vunpack.c.l.b16 %v333
    %v437 = vunpack.c.l.b16 %v334
    %v438 = vunpack.c.l.b16 %v335
    %v439 = vunpack.c.l.b16 %v336
    %v440 = vunpack.c.l.b16 %v337
    %v441 = vunpack.c.l.b16 %v338
    %v442 = vunpack.c.l.b16 %v339
    %v443 = vunpack.c.l.b16 %v340
    %v444 = vunpack.c.l.b16 %v341
    %v445 = vunpack.c.l.b16 %v342
    %v446 = vunpack.c.l.b16 %v343
    %v447 = vunpack.c.l.b16 %v344
    %v448 = vunpack.c.l.b16 %v345
    %v449 = vunpack.c.l.b16 %v346
    %v450 = vunpack.c.l.b16 %v347
    %v451 = vunpack.c.l.b16 %v348
    %v452 = vunpack.c.l.b16 %v349
    %v453 = vunpack.c.l.b16 %v350
    %v454 = vunpack.c.l.b16 %v351
    %v455 = vunpack.c.l.b16 %v352
    %v456 = vunpack.c.l.b16 %v353
    %v457 = vunpack.c.l.b16 %v354
    %v458 = vunpack.c.l.b16 %v355
    %v459 = vunpack.c.l.b16 %v356
    %v460 = vunpack.c.l.b16 %v357
    %v461 = vunpack.c.l.b16 %v358
    %v462 = vunpack.c.l.b16 %v359
    %v463 = vunpack.c.l.b16 %v360
    %v464 = vunpack.c.l.b16 %v361
    %v465 = vunpack.c.l.b16 %v362
    %v466 = vunpack.c.l.b16 %v363
    %v467 = vunpack.c.l.b16 %v364
    %v468 = vunpack.c.l.b16 %v365
    %v469 = vunpack.c.l.b16 %v366
    %v470 = vunpack.c.l.b16 %v367
    %v471 = vunpack.c.l.b16 %v368
    %v472 = vunpack.c.l.b16 %v369
    %v473 = vunpack.c.l.b16 %v370
    %v474 = vpack.c.b16 %v427, %v426
    %v475 = vpack.c.b16 %v429, %v428
    %v476 = vpack.c.b16 %v431, %v430
    %v477 = vpack.c.b16 %v433, %v432
    %v478 = vpack.c.b16 %v435, %v434
    %v479 = vpack.c.b16 %v437, %v436
    %v480 = vpack.c.b16 %v439, %v438
    %v481 = vpack.c.b16 %v441, %v440
    %v482 = vpack.c.b16 %v443, %v442
    %v483 = vpack.c.b16 %v445, %v444
    %v484 = vpack.c.b16 %v447, %v446
    %v485 = vpack.c.b16 %v449, %v448
    %v486 = vpack.c.b16 %v451, %v450
    %v487 = vpack.c.b16 %v453, %v452
    %v488 = vpack.c.b16 %v455, %v454
    %v489 = vpack.c.b16 %v457, %v456
    %v490 = vpack.c.b16 %v459, %v458
    %v491 = vpack.c.b16 %v461, %v460
    %v492 = vpack.c.b16 %v463, %v462
    %v493 = vpack.c.b16 %v465, %v464
    %v494 = vpack.c.b16 %v467, %v466
    %v495 = vpack.c.b16 %v469, %v468
    %v496 = vpack.c.b16 %v471, %v470
    %v497 = vpack.c.b16 %v473, %v472
    %522 = vmatprep.subr.bf16.mxu0 0
    %523 = vmatpush1.bf16.msra.mxu0 %v474
    %524 = vmatprep.subr.bf16.mxu0 0
    %525 = vmatpush1.bf16.msra.mxu0 %v475
    %526 = vmatprep.subr.bf16.mxu0 0
    %527 = vmatpush1.bf16.msra.mxu0 %v476
    %528 = vmatprep.subr.bf16.mxu0 0
    %529 = vmatpush1.bf16.msra.mxu0 %v477
    %530 = vmatprep.subr.bf16.mxu0 0
    %531 = vmatpush1.bf16.msra.mxu0 %v478
    %532 = vmatprep.subr.bf16.mxu0 0
    %533 = vmatpush1.bf16.msra.mxu0 %v479
    %534 = vmatprep.subr.bf16.mxu0 0
    %535 = vmatpush1.bf16.msra.mxu0 %v480
    %536 = vmatprep.subr.bf16.mxu0 0
    %537 = vmatpush1.bf16.msra.mxu0 %v481
    %538 = vmatprep.subr.bf16.mxu0 0
    %539 = vmatpush1.bf16.msra.mxu0 %v482
    %540 = vmatprep.subr.bf16.mxu0 0
    %541 = vmatpush1.bf16.msra.mxu0 %v483
    %542 = vmatprep.subr.bf16.mxu0 0
    %543 = vmatpush1.bf16.msra.mxu0 %v484
    %544 = vmatprep.subr.bf16.mxu0 0
    %545 = vmatpush1.bf16.msra.mxu0 %v485
    %546 = vmatprep.subr.bf16.mxu0 0
    %547 = vmatpush1.bf16.msra.mxu0 %v486
    %548 = vmatprep.subr.bf16.mxu0 0
    %549 = vmatpush1.bf16.msra.mxu0 %v487
    %550 = vmatprep.subr.bf16.mxu0 0
    %551 = vmatpush1.bf16.msra.mxu0 %v488
    %552 = vmatprep.subr.bf16.mxu0 0
    %553 = vmatpush1.bf16.msra.mxu0 %v489
    %554 = vmatprep.mubr.bf16.mxu0 %v315
    %555 = vmatmul.mubr.bf16.gmra.mrb[0].mxu0 %v311
    %v556 = vpop.f32.mrb[0].mxu0
    %v557 = vadd.f32 %v376, %v556
    %v558 = vpop.f32.mrb[0].mxu0
    %v559 = vpop.f32.mrb[0].mxu0
    %v560 = vadd.f32 %v376, %v559
    %v561 = vpop.f32.mrb[0].mxu0
    %562 = vmatprep.mubr.bf16.mxu0 %v316
    %563 = vmatmul.mubr.bf16.gmra.mrb[0].mxu0 %v312
    %v564 = vpop.f32.mrb[0].mxu0
    %v565 = vadd.f32 %v376, %v564
    %v566 = vpop.f32.mrb[0].mxu0
    %v567 = vpop.f32.mrb[0].mxu0
    %v568 = vadd.f32 %v376, %v567
    %v569 = vpop.f32.mrb[0].mxu0
    %570 = vmatprep.mubr.bf16.mxu0 %v317
    %571 = vmatmul.mubr.bf16.gmra.mrb[0].mxu0 %v313
    %v572 = vpop.f32.mrb[0].mxu0
    %v573 = vadd.f32 %v376, %v572
    %v574 = vpop.f32.mrb[0].mxu0
    %v575 = vpop.f32.mrb[0].mxu0
    %v576 = vadd.f32 %v376, %v575
    %v577 = vpop.f32.mrb[0].mxu0
    %578 = vmatprep.mubr.bf16.mxu0 %v318
    %579 = vmatmul.mubr.bf16.gmra.mrb[0].mxu0 %v314
    %v580 = vpop.f32.mrb[0].mxu0
    %v581 = vadd.f32 %v376, %v580
    %v582 = vpop.f32.mrb[0].mxu0
    %v583 = vpop.f32.mrb[0].mxu0
    %v584 = vadd.f32 %v376, %v583
    %v585 = vpop.f32.mrb[0].mxu0
    %586 = vdwg.mxu0
    %587 = vmatprep.subr.bf16.mxu0 0
    %588 = vmatpush1.bf16.msra.mxu0 %v490
    %589 = vmatprep.subr.bf16.mxu0 0
    %590 = vmatpush1.bf16.msra.mxu0 %v491
    %591 = vmatprep.subr.bf16.mxu0 0
    %592 = vmatpush1.bf16.msra.mxu0 %v492
    %593 = vmatprep.subr.bf16.mxu0 0
    %594 = vmatpush1.bf16.msra.mxu0 %v493
    %595 = vmatprep.subr.bf16.mxu0 0
    %596 = vmatpush1.bf16.msra.mxu0 %v494
    %597 = vmatprep.subr.bf16.mxu0 0
    %598 = vmatpush1.bf16.msra.mxu0 %v495
    %599 = vmatprep.subr.bf16.mxu0 0
    %600 = vmatpush1.bf16.msra.mxu0 %v496
    %601 = vmatprep.subr.bf16.mxu0 0
    %602 = vmatpush1.bf16.msra.mxu0 %v497
    %603 = vmatprep.subr.bf16.mxu0 0
    %604 = vmatpush1.bf16.msra.mxu0 0
    %605 = vmatprep.subr.bf16.mxu0 0
    %606 = vmatpush1.bf16.msra.mxu0 0
    %607 = vmatprep.subr.bf16.mxu0 0
    %608 = vmatpush1.bf16.msra.mxu0 0
    %609 = vmatprep.subr.bf16.mxu0 0
    %610 = vmatpush1.bf16.msra.mxu0 0
    %611 = vmatprep.subr.bf16.mxu0 0
    %612 = vmatpush1.bf16.msra.mxu0 0
    %613 = vmatprep.subr.bf16.mxu0 0
    %614 = vmatpush1.bf16.msra.mxu0 0
    %615 = vmatprep.subr.bf16.mxu0 0
    %616 = vmatpush1.bf16.msra.mxu0 0
    %617 = vmatprep.subr.bf16.mxu0 0
    %618 = vmatpush1.bf16.msra.mxu0 0
    %619 = vmatprep.mubr.bf16.mxu0 0
    %620 = vmatmul.mubr.bf16.gmra.mrb[0].mxu0 %v319
    %v621 = vpop.f32.mrb[0].mxu0
    %v622 = vadd.f32 %v557, %v621
    %v623 = vpop.f32.mrb[0].mxu0
    %v624 = vpop.f32.mrb[0].mxu0
    %v625 = vadd.f32 %v560, %v624
    %v626 = vpop.f32.mrb[0].mxu0
    %627 = vmatprep.mubr.bf16.mxu0 0
    %628 = vmatmul.mubr.bf16.gmra.mrb[0].mxu0 %v320
    %v629 = vpop.f32.mrb[0].mxu0
    %v630 = vadd.f32 %v565, %v629
    %v631 = vpop.f32.mrb[0].mxu0
    %v632 = vpop.f32.mrb[0].mxu0
    %v633 = vadd.f32 %v568, %v632
    %v634 = vpop.f32.mrb[0].mxu0
    %635 = vmatprep.mubr.bf16.mxu0 0
    %636 = vmatmul.mubr.bf16.gmra.mrb[0].mxu0 %v321
    %v637 = vpop.f32.mrb[0].mxu0
    %v638 = vadd.f32 %v573, %v637
    %v639 = vpop.f32.mrb[0].mxu0
    %v640 = vpop.f32.mrb[0].mxu0
    %v641 = vadd.f32 %v576, %v640
    %v642 = vpop.f32.mrb[0].mxu0
    %643 = vmatprep.mubr.bf16.mxu0 0
    %644 = vmatmul.mubr.bf16.gmra.mrb[0].mxu0 %v322
    %v645 = vpop.f32.mrb[0].mxu0
    %v646 = vadd.f32 %v581, %v645
    %v647 = vpop.f32.mrb[0].mxu0
    %v648 = vpop.f32.mrb[0].mxu0
    %v649 = vadd.f32 %v584, %v648
    %v650 = vpop.f32.mrb[0].mxu0
    %651 = vdwg.mxu0
    %v652 = vmax.f32 %v622, 0.0
    %v653 = vmax.f32 %v625, 0.0
    %v654 = vmax.f32 %v630, 0.0
    %v655 = vmax.f32 %v633, 0.0
    %v656 = vmax.f32 %v638, 0.0
    %v657 = vmax.f32 %v641, 0.0
    %v658 = vmax.f32 %v646, 0.0
    %v659 = vmax.f32 %v649, 0.0
    %v660 = vsel %vm84, %v659, 0.0
    %v661 = vsel %vm85, %v652, 0.0
    %v662 = vsel %vm86, %v653, 0.0
    %v663 = vsel %vm87, %v654, 0.0
    %v664 = vsel %vm88, %v655, 0.0
    %v665 = vsel %vm89, %v656, 0.0
    %v666 = vsel %vm90, %v657, 0.0
    %v667 = vsel %vm91, %v658, 0.0
    %v668 = vsel %vm108, %v653, 0.0
    %v669 = vsel %vm109, %v654, 0.0
    %v670 = vsel %vm110, %v655, 0.0
    %v671 = vsel %vm111, %v656, 0.0
    %v672 = vsel %vm112, %v657, 0.0
    %v673 = vsel %vm113, %v658, 0.0
    %v674 = vsel %vm114, %v659, 0.0
    %v675 = vsel %vm115, %v652, 0.0
    %v676 = vpack.c.bf16 %v661, %v660
    %v677 = vpack.c.bf16 %v663, %v662
    %v678 = vpack.c.bf16 %v665, %v664
    %v679 = vpack.c.bf16 %v667, %v666
    %v680 = vpack.c.bf16 %v653, %v652
    %v681 = vpack.c.bf16 %v655, %v654
    %v682 = vpack.c.bf16 %v657, %v656
    %v683 = vpack.c.bf16 %v659, %v658
    %v684 = vpack.c.bf16 %v669, %v668
    %v685 = vpack.c.bf16 %v671, %v670
    %v686 = vpack.c.bf16 %v673, %v672
    %v687 = vpack.c.bf16 %v675, %v674
    %692 = vrot.lane.b32.xlu0 %v680, 64
    %v693 = vpop.permute.xlu0 %692
    %694 = vrot.lane.b32.xlu0 %v681, 64
    %v695 = vpop.permute.xlu0 %694
    %696 = vrot.lane.b32.xlu0 %v682, 64
    %v697 = vpop.permute.xlu0 %696
    %698 = vrot.lane.b32.xlu0 %v683, 64
    %v699 = vpop.permute.xlu0 %698
    %vm700 = vcmask 523264
    %v703 = vsel %vm700, %v676, %v693
    %v707 = vsel %vm700, %v677, %v695
    %v711 = vsel %vm700, %v678, %v697
    %v715 = vsel %vm700, %v679, %v699
    %v717 = vld [vmem:[%s5] sm:$0xf]
    %v718 = vld [vmem:[%s5 + $0x4] sm:$0xf]
    %v719 = vld [vmem:[%s5 + $0x8] sm:$0xf]
    %v720 = vld [vmem:[%s5 + $0xc] sm:$0xf]
    %v721 = vld [vmem:[%s5 + $0x10] sm:$0xf]
    %v722 = vld [vmem:[%s5 + $0x14] sm:$0xf]
    %v723 = vld [vmem:[%s5 + $0x18] sm:$0xf]
    %v724 = vld [vmem:[%s5 + $0x1c] sm:$0xf]
    %v725 = vld [vmem:[%s5 + $0x20] sm:$0xf]
    %v726 = vld [vmem:[%s5 + $0x24] sm:$0xf]
    %v727 = vld [vmem:[%s5 + $0x28] sm:$0xf]
    %v728 = vld [vmem:[%s5 + $0x2c] sm:$0xf]
    %v729 = vld [vmem:[%s5 + $0x30] sm:$0xf]
    %v730 = vld [vmem:[%s5 + $0x34] sm:$0xf]
    %v731 = vld [vmem:[%s5 + $0x38] sm:$0xf]
    %v732 = vld [vmem:[%s5 + $0x3c] sm:$0xf]
    %v733 = vld [vmem:[%s5 + $0x40] sm:$0xf]
    %v734 = vld [vmem:[%s5 + $0x44] sm:$0xf]
    %v735 = vld [vmem:[%s5 + $0x48] sm:$0xf]
    %v736 = vld [vmem:[%s5 + $0x4c] sm:$0xf]
    %v737 = vld [vmem:[%s5 + $0x50] sm:$0xf]
    %v738 = vld [vmem:[%s5 + $0x54] sm:$0xf]
    %v739 = vld [vmem:[%s5 + $0x58] sm:$0xf]
    %v740 = vld [vmem:[%s5 + $0x5c] sm:$0xf]
    %v741 = vld [vmem:[%s6] sm:$0x1]
    %v743 = vlaneseq
    %v744 = vshrl.u32 %v743, 7
    %v745 = vsub.s32 0, %v744
    %v746 = vrot.slane %v741, %v745
    %v772 = vunpack.c.l.b16 %v717
    %v773 = vunpack.c.l.b16 %v718
    %v774 = vunpack.c.l.b16 %v719
    %v775 = vunpack.c.l.b16 %v720
    %v776 = vunpack.c.l.b16 %v721
    %v777 = vunpack.c.l.b16 %v722
    %v778 = vunpack.c.l.b16 %v723
    %v779 = vunpack.c.l.b16 %v724
    %v780 = vunpack.c.l.b16 %v725
    %v781 = vunpack.c.l.b16 %v726
    %v782 = vunpack.c.l.b16 %v727
    %v783 = vunpack.c.l.b16 %v728
    %v784 = vunpack.c.l.b16 %v729
    %v785 = vunpack.c.l.b16 %v730
    %v786 = vunpack.c.l.b16 %v731
    %v787 = vunpack.c.l.b16 %v732
    %v788 = vunpack.c.l.b16 %v733
    %v789 = vunpack.c.l.b16 %v734
    %v790 = vunpack.c.l.b16 %v735
    %v791 = vunpack.c.l.b16 %v736
    %v792 = vunpack.c.l.b16 %v737
    %v793 = vunpack.c.l.b16 %v738
    %v794 = vunpack.c.l.b16 %v739
    %v795 = vunpack.c.l.b16 %v740
    %v796 = vpack.c.b16 %v773, %v772
    %v797 = vpack.c.b16 %v775, %v774
    %v798 = vpack.c.b16 %v777, %v776
    %v799 = vpack.c.b16 %v779, %v778
    %v800 = vpack.c.b16 %v781, %v780
    %v801 = vpack.c.b16 %v783, %v782
    %v802 = vpack.c.b16 %v785, %v784
    %v803 = vpack.c.b16 %v787, %v786
    %v804 = vpack.c.b16 %v789, %v788
    %v805 = vpack.c.b16 %v791, %v790
    %v806 = vpack.c.b16 %v793, %v792
    %v807 = vpack.c.b16 %v795, %v794
    %v821 = vsel %vm700, %v684, 0
    %v824 = vsel %vm700, %v685, 0
    %v827 = vsel %vm700, %v686, 0
    %v830 = vsel %vm700, %v687, 0
    %832 = vmatprep.subr.bf16.mxu0 0
    %833 = vmatpush1.bf16.msra.mxu0 %v796
    %834 = vmatprep.subr.bf16.mxu0 0
    %835 = vmatpush1.bf16.msra.mxu0 %v797
    %836 = vmatprep.subr.bf16.mxu0 0
    %837 = vmatpush1.bf16.msra.mxu0 %v798
    %838 = vmatprep.subr.bf16.mxu0 0
    %839 = vmatpush1.bf16.msra.mxu0 %v799
    %840 = vmatprep.subr.bf16.mxu0 0
    %841 = vmatpush1.bf16.msra.mxu0 %v800
    %842 = vmatprep.subr.bf16.mxu0 0
    %843 = vmatpush1.bf16.msra.mxu0 %v801
    %844 = vmatprep.subr.bf16.mxu0 0
    %845 = vmatpush1.bf16.msra.mxu0 %v802
    %846 = vmatprep.subr.bf16.mxu0 0
    %847 = vmatpush1.bf16.msra.mxu0 %v803
    %848 = vmatprep.subr.bf16.mxu0 0
    %849 = vmatpush1.bf16.msra.mxu0 %v804
    %850 = vmatprep.subr.bf16.mxu0 0
    %851 = vmatpush1.bf16.msra.mxu0 %v805
    %852 = vmatprep.subr.bf16.mxu0 0
    %853 = vmatpush1.bf16.msra.mxu0 %v806
    %854 = vmatprep.subr.bf16.mxu0 0
    %855 = vmatpush1.bf16.msra.mxu0 %v807
    %856 = vmatprep.subr.bf16.mxu0 0
    %857 = vmatpush1.bf16.msra.mxu0 0
    %858 = vmatprep.subr.bf16.mxu0 0
    %859 = vmatpush1.bf16.msra.mxu0 0
    %860 = vmatprep.subr.bf16.mxu0 0
    %861 = vmatpush1.bf16.msra.mxu0 0
    %862 = vmatprep.subr.bf16.mxu0 0
    %863 = vmatpush1.bf16.msra.mxu0 0
    %864 = vmatprep.mubr.bf16.mxu0 %v821
    %865 = vmatmul.mubr.bf16.gmra.mrb[0].mxu0 %v703
    %v866 = vpop.f32.mrb[0].mxu0
    %v867 = vadd.f32 %v746, %v866
    %v868 = vpop.f32.mrb[0].mxu0
    %v869 = vpop.f32.mrb[0].mxu0
    %v870 = vadd.f32 %v746, %v869
    %v871 = vpop.f32.mrb[0].mxu0
    %872 = vmatprep.mubr.bf16.mxu0 %v824
    %873 = vmatmul.mubr.bf16.gmra.mrb[0].mxu0 %v707
    %v874 = vpop.f32.mrb[0].mxu0
    %v875 = vadd.f32 %v746, %v874
    %v876 = vpop.f32.mrb[0].mxu0
    %v877 = vpop.f32.mrb[0].mxu0
    %v878 = vadd.f32 %v746, %v877
    %v879 = vpop.f32.mrb[0].mxu0
    %880 = vmatprep.mubr.bf16.mxu0 %v827
    %881 = vmatmul.mubr.bf16.gmra.mrb[0].mxu0 %v711
    %v882 = vpop.f32.mrb[0].mxu0
    %v883 = vadd.f32 %v746, %v882
    %v884 = vpop.f32.mrb[0].mxu0
    %v885 = vpop.f32.mrb[0].mxu0
    %v886 = vadd.f32 %v746, %v885
    %v887 = vpop.f32.mrb[0].mxu0
    %888 = vmatprep.mubr.bf16.mxu0 %v830
    %889 = vmatmul.mubr.bf16.gmra.mrb[0].mxu0 %v715
    %v890 = vpop.f32.mrb[0].mxu0
    %v891 = vadd.f32 %v746, %v890
    %v892 = vpop.f32.mrb[0].mxu0
    %v893 = vpop.f32.mrb[0].mxu0
    %v894 = vadd.f32 %v746, %v893
    %v895 = vpop.f32.mrb[0].mxu0
    %896 = vdwg.mxu0
    %v897 = vmax.f32 %v867, 0.0
    %v898 = vmax.f32 %v870, 0.0
    %v899 = vmax.f32 %v875, 0.0
    %v900 = vmax.f32 %v878, 0.0
    %v901 = vmax.f32 %v883, 0.0
    %v902 = vmax.f32 %v886, 0.0
    %v903 = vmax.f32 %v891, 0.0
    %v904 = vmax.f32 %v894, 0.0
    %v905 = vmax.f32 %v287, %v291
    %v906 = vmax.f32 %v288, %v292
    %v907 = vmax.f32 %v289, %v293
    %v908 = vmax.f32 %v290, %v294
    %v909 = vmax.f32 %v905, %v906
    %v910 = vmax.f32 %v907, %v908
    %v911 = vmax.f32 %v909, %v910
    %v912 = vsel %vm700, %v652, -inf
    %v913 = vsel %vm700, %v653, -inf
    %v914 = vsel %vm700, %v654, -inf
    %v915 = vsel %vm700, %v655, -inf
    %v916 = vsel %vm700, %v656, -inf
    %v917 = vmax.f32 %v912, %v916
    %v918 = vsel %vm700, %v657, -inf
    %v919 = vmax.f32 %v913, %v918
    %v920 = vsel %vm700, %v658, -inf
    %v921 = vmax.f32 %v914, %v920
    %v922 = vsel %vm700, %v659, -inf
    %v923 = vmax.f32 %v915, %v922
    %v924 = vmax.f32 %v917, %v919
    %v925 = vmax.f32 %v921, %v923
    %v926 = vmax.f32 %v924, %v925
    %v927 = vsel %vm700, %v897, -inf
    %v928 = vsel %vm700, %v898, -inf
    %v929 = vsel %vm700, %v899, -inf
    %v930 = vsel %vm700, %v900, -inf
    %v931 = vsel %vm700, %v901, -inf
    %v932 = vmax.f32 %v927, %v931
    %v933 = vsel %vm700, %v902, -inf
    %v934 = vmax.f32 %v928, %v933
    %v935 = vsel %vm700, %v903, -inf
    %v936 = vmax.f32 %v929, %v935
    %v937 = vsel %vm700, %v904, -inf
    %v938 = vmax.f32 %v930, %v937
    %v939 = vmax.f32 %v932, %v934
    %v940 = vmax.f32 %v936, %v938
    %v941 = vmax.f32 %v939, %v940
    %943 = vrot.lane.b32.xlu0 %v941, 64
    %v944 = vpop.permute.xlu0 %943
    %v946 = vsel %vm700, %v926, %v944
    %947 = vst [vmem:[#allocation2] sm:$0xff] %v911
    %948 = vst [vmem:[#allocation2 + $0x8] sm:$0xff] %v946
    // Predicated region
    $region30: #{tpu_custom_call.1} parent=1 // pred_check
      _
    $region31: #{tpu_custom_call.1} parent=1 // pred_check_branch
      %950 = sbr.rel (0) target = $region33
    $region32: #{tpu_custom_call.1} parent=1 // pred_region
      %s952 = ssub.s32 256, 256
      %953 = vsyncadd [#allocation3], %s952
      %s955 = sshll.u32 [#allocation2], 4
      %s956 = int_to_ptr.vmem [resolvable:$true] %s955
      %958 = dma.vmem_to_hbm [thread:$0]  %s956, 256, %s7, [#allocation3]
    $region33: #{tpu_custom_call.1} parent=1 // pred_fallthru
      _
    // Predicated region
    $region34: #{tpu_custom_call.1} parent=1 // pred_check
      _
    $region35: #{tpu_custom_call.1} parent=1 // pred_check_branch
      %960 = sbr.rel (0) target = $region37
    $region36: #{tpu_custom_call.1} parent=1 // pred_region
      %961 = dma.done [#allocation3], 256
    $region37: #{tpu_custom_call.1} parent=1 // pred_fallthru
      _
    %962 = vsyncpa [#allocation3], 1

</llo_original>
